<compile_context>
chip_gen: v7x
topology: tpu7x:2x2x1
jax: 0.10.0
libtpu: 0.0.40
codegen_flags: <defaults>
</compile_context>

<pallas_src>
import jax
import jax.numpy as jnp
from jax.experimental import pallas as pl
from jax.experimental.pallas import tpu as pltpu


def cbam_kernel(x_ref, w1_ref, b1_ref, w2_ref, b2_ref, k_ref, bn_ref, out_ref):
    # x_ref block: (Bb, C, HW) lane-dense tile, native dtype (f32 or bf16).
    x = x_ref[...]

    # ---------------- Channel gate (batched over the Bb images) ----------------
    # 1/HW is folded into W1 in the wrapper, so a raw lane-sum suffices.
    avg = jnp.sum(x, axis=2).astype(jnp.float32)                       # (Bb, C)
    hid = jnp.dot(avg, w1_ref[...], preferred_element_type=jnp.float32) + b1_ref[...]
    hid = jnp.maximum(hid, 0.0)                                        # (Bb, Hd)
    att = jnp.dot(hid, w2_ref[...], preferred_element_type=jnp.float32) + b2_ref[...]
    sigma_c = jax.nn.sigmoid(att).astype(x.dtype)                      # (Bb, C)
    x_ca = x * sigma_c[:, :, None]                                     # lane-broadcast scale

    # ---------------- Spatial gate (one M=Bb MXU matmul for the 7x7 conv) ------
    # 1/C and the folded eval-mode BatchNorm scale are pre-multiplied into kmat.
    pooled = jnp.sum(x_ca, axis=1)                                     # (Bb, HW) channel sum
    conv = jnp.dot(pooled.astype(k_ref.dtype), k_ref[...],
                   preferred_element_type=jnp.float32)                 # (Bb, HW)
    sig_s = jax.nn.sigmoid(conv + bn_ref[0]).astype(x.dtype)           # (Bb, HW)

    out_ref[...] = (x_ca * sig_s[:, None, :]).astype(out_ref.dtype)    # sublane-broadcast scale


def _conv7x7_as_matrix(conv_w, H, W):
    """Build K (H*W, H*W) s.t. (pooled_flat @ K) == conv2d(pooled, w, pad=3)."""
    w = conv_w.reshape(7, 7).astype(jnp.float32)
    pad = 3
    di = jnp.arange(H)[:, None] - jnp.arange(H)[None, :] + pad     # (p, i)
    dj = jnp.arange(W)[:, None] - jnp.arange(W)[None, :] + pad     # (q, j)
    mi = (di >= 0) & (di < 7)
    mj = (dj >= 0) & (dj < 7)
    wi = jnp.clip(di, 0, 6)
    wj = jnp.clip(dj, 0, 6)
    k4 = w[wi[:, :, None, None], wj[None, None, :, :]]             # (H, H, W, W) [p,i,q,j]
    k4 = k4 * (mi[:, :, None, None] & mj[None, None, :, :]).astype(jnp.float32)
    # rows indexed by input pixel p*W+q, cols by output pixel i*W+j
    return k4.transpose(0, 2, 1, 3).reshape(H * W, H * W)


def _pick_block_batch(B, bytes_per_image, max_images_per_block):
    """Largest divisor of B that keeps >= 2-4 grid steps and ~<=512 KiB x blocks."""
    target_bytes = 512 * 1024
    size_cap = max(1, target_bytes // max(1, bytes_per_image))
    min_steps = 4 if B >= 4 else max(1, B)          # >= 2 steps whenever B >= 2
    steps_cap = max(1, B // min_steps)
    cap = max(1, min(size_cap, steps_cap, max_images_per_block))
    bb = 1
    for d in range(1, cap + 1):
        if B % d == 0:
            bb = d
    return bb


def cbam_forward(x_nchw, params, *, max_images_per_block=8):
    """x_nchw: (B, C, H, W) -> (B, C, H, W), dtype preserved (f32 or bf16)."""
    B, C, H, W = x_nchw.shape
    Hd = params["w1"].shape[0]
    HW = H * W

    # Free reshape of the contiguous NCHW tensor — no transpose, no extra HBM pass.
    x_flat = x_nchw.reshape(B, C, HW)

    inv_hw = 1.0 / HW
    inv_c = 1.0 / C
    eps = 1e-5
    bn_scale = params["bn_gamma"] / jnp.sqrt(params["bn_var"] + eps)
    bn_bias = jnp.reshape(params["bn_beta"] - params["bn_mean"] * bn_scale,
                          (1,)).astype(jnp.float32)

    # Gate parameters, transposed for batched (Bb, C) @ (C, Hd) matmuls; 1/HW folded.
    w1t = (params["w1"] * inv_hw).T.astype(jnp.float32)       # (C, Hd)
    b1 = params["b1"].reshape(1, Hd).astype(jnp.float32)
    w2t = params["w2"].T.astype(jnp.float32)                  # (Hd, C)
    b2 = params["b2"].reshape(1, C).astype(jnp.float32)

    # 7x7 "same" conv as a dense (HW, HW) matrix, with 1/C and BN scale folded in.
    # Small maps stay f32 (exactness); big maps use bf16 to halve VMEM footprint.
    kmat_dtype = jnp.bfloat16 if HW >= 1024 else jnp.float32
    kmat = (_conv7x7_as_matrix(params["conv_w"], H, W)
            * (inv_c * bn_scale)).astype(kmat_dtype)

    # Block-batch: keep the grid >= 2 steps (pipelining + both v7x TensorCores),
    # while aiming for ~512 KiB x-blocks per step at larger batch sizes.
    Bb = _pick_block_batch(B, C * HW * x_flat.dtype.itemsize, max_images_per_block)
    grid = (B // Bb,)

    out_flat = pl.pallas_call(
        cbam_kernel,
        out_shape=jax.ShapeDtypeStruct((B, C, HW), x_flat.dtype),
        grid_spec=pltpu.PrefetchScalarGridSpec(
            num_scalar_prefetch=0,
            grid=grid,
            in_specs=[
                pl.BlockSpec((Bb, C, HW), lambda g: (g, 0, 0)),      # x (flattened NCHW)
                pl.BlockSpec((C, Hd), lambda g: (0, 0)),             # W1^T (1/HW folded)
                pl.BlockSpec((1, Hd), lambda g: (0, 0)),             # b1
                pl.BlockSpec((Hd, C), lambda g: (0, 0)),             # W2^T
                pl.BlockSpec((1, C), lambda g: (0, 0)),              # b2
                pl.BlockSpec((HW, HW), lambda g: (0, 0)),            # conv matrix (BN scale, 1/C folded)
                pl.BlockSpec(memory_space=pltpu.MemorySpace.SMEM),   # folded BN bias (scalar)
            ],
            out_specs=pl.BlockSpec((Bb, C, HW), lambda g: (g, 0, 0)),
        ),
        compiler_params=pltpu.CompilerParams(
            dimension_semantics=("parallel",),   # batch blocks are independent (v7x 2 TCs)
        ),
    )(x_flat, w1t, b1, w2t, b2, kmat, bn_bias)

    return out_flat.reshape(B, C, H, W)


def cbam_reference(x, p):
    """Pure-JAX reference mirroring the PyTorch forward (eval-mode BN)."""
    avg = jnp.mean(x, axis=(2, 3))                          # (B, C)
    h = jax.nn.relu(avg @ p["w1"].T + p["b1"])
    att = h @ p["w2"].T + p["b2"]
    sigma = jax.nn.sigmoid(att)
    x_ca = x * sigma[:, :, None, None]
    pooled = jnp.mean(x_ca, axis=1, keepdims=True)          # (B, 1, H, W)
    conv = jax.lax.conv_general_dilated(
        pooled, p["conv_w"], window_strides=(1, 1), padding=[(3, 3), (3, 3)],
        dimension_numbers=("NCHW", "OIHW", "NCHW"))
    eps = 1e-5
    bn = (conv - p["bn_mean"]) / jnp.sqrt(p["bn_var"] + eps) * p["bn_gamma"] + p["bn_beta"]
    return x_ca * jax.nn.sigmoid(bn)


if __name__ == "__main__":
    B, C, H, W = 2, 64, 16, 16           # gate_channels = C = 64, reduction = 16
    reduction = 16
    Hd = C // reduction

    key = jax.random.PRNGKey(0)
    kx, k1, k2, k3, k4, k5 = jax.random.split(key, 6)

    x = jax.random.normal(kx, (B, C, H, W), jnp.float32)

    params = {
        "w1": 0.1 * jax.random.normal(k1, (Hd, C), jnp.float32),   # Linear(C, C//r)
        "b1": 0.1 * jax.random.normal(k2, (Hd,), jnp.float32),
        "w2": 0.1 * jax.random.normal(k3, (C, Hd), jnp.float32),   # Linear(C//r, C)
        "b2": 0.1 * jax.random.normal(k4, (C,), jnp.float32),
        "conv_w": 0.1 * jax.random.normal(k5, (1, 1, 7, 7), jnp.float32),
        "bn_gamma": jnp.float32(1.2),
        "bn_beta": jnp.float32(0.1),
        "bn_mean": jnp.float32(0.05),
        "bn_var": jnp.float32(0.8),
    }

    out = jax.jit(cbam_forward)(x, params)
    out = jax.block_until_ready(out)

    ref = cbam_reference(x, params)
    max_err = float(jnp.max(jnp.abs(out - ref)))
    if not (max_err < 2e-4):
        raise SystemExit(f"mismatch vs reference: max abs err = {max_err}")

    print("KERNEL_OK")
</pallas_src>

<mosaic_0001>
module attributes {stable_mosaic.version = 11 : i64} {
  func.func @cbam_kernel(%arg0: i32, %arg1: memref<1x64x256xf32, #tpu.memory_space<vmem>>, %arg2: memref<64x4xf32, #tpu.memory_space<vmem>>, %arg3: memref<1x4xf32, #tpu.memory_space<vmem>>, %arg4: memref<4x64xf32, #tpu.memory_space<vmem>>, %arg5: memref<1x64xf32, #tpu.memory_space<vmem>>, %arg6: memref<256x256xf32, #tpu.memory_space<vmem>>, %arg7: memref<1xf32, #tpu.memory_space<smem>>, %arg8: memref<1x64x256xf32, #tpu.memory_space<vmem>>) attributes {dimension_semantics = [#tpu.dimension_semantics<parallel>], iteration_bounds = array<i64: 2>, scalar_prefetch = 0 : i64, scratch_operands = 0 : i64, tpu.core_type = #tpu.core_type<tc>, window_params = [{transform_indices = @transform_0, window_bounds = array<i64: 1, 64, 256>}, {pipeline_mode = #tpu.pipeline_mode<synchronous>, transform_indices = @transform_1, window_bounds = array<i64: 64, 4>}, {pipeline_mode = #tpu.pipeline_mode<synchronous>, transform_indices = @transform_2, window_bounds = array<i64: 1, 4>}, {pipeline_mode = #tpu.pipeline_mode<synchronous>, transform_indices = @transform_3, window_bounds = array<i64: 4, 64>}, {pipeline_mode = #tpu.pipeline_mode<synchronous>, transform_indices = @transform_4, window_bounds = array<i64: 1, 64>}, {pipeline_mode = #tpu.pipeline_mode<synchronous>, transform_indices = @transform_5, window_bounds = array<i64: 256, 256>}, {transform_indices = @transform_6, window_bounds = array<i64: 1>}, {transform_indices = @transform_7, window_bounds = array<i64: 1, 64, 256>}]} {
    %c0 = arith.constant 0 : index
    %c0_0 = arith.constant 0 : index
    %c0_1 = arith.constant 0 : index
    %0 = vector.load %arg1[%c0, %c0_0, %c0_1] : memref<1x64x256xf32, #tpu.memory_space<vmem>>, vector<1x64x256xf32>
    %cst = arith.constant dense<0.000000e+00> : vector<1x64xf32>
    %1 = vector.multi_reduction <add>, %0, %cst [2] : vector<1x64x256xf32> to vector<1x64xf32>
    %c0_2 = arith.constant 0 : index
    %c0_3 = arith.constant 0 : index
    %2 = vector.load %arg2[%c0_2, %c0_3] : memref<64x4xf32, #tpu.memory_space<vmem>>, vector<64x4xf32>
    %cst_4 = arith.constant dense<0.000000e+00> : vector<1x4xf32>
    %3 = tpu.matmul %1, %2, %cst_4 {dimension_numbers = #tpu.dot_dimension_numbers<[1], [0], [0], [1], [0, 0, 1, 1], [], []>} : vector<1x64xf32>, vector<64x4xf32>, vector<1x4xf32> -> vector<1x4xf32>
    %c0_5 = arith.constant 0 : index
    %c0_6 = arith.constant 0 : index
    %4 = vector.load %arg3[%c0_5, %c0_6] : memref<1x4xf32, #tpu.memory_space<vmem>>, vector<1x4xf32>
    %5 = arith.addf %3, %4 : vector<1x4xf32>
    %cst_7 = arith.constant 0.000000e+00 : f32
    %6 = vector.broadcast %cst_7 : f32 to vector<1x4xf32>
    %7 = arith.maximumf %5, %6 : vector<1x4xf32>
    %c0_8 = arith.constant 0 : index
    %c0_9 = arith.constant 0 : index
    %8 = vector.load %arg4[%c0_8, %c0_9] : memref<4x64xf32, #tpu.memory_space<vmem>>, vector<4x64xf32>
    %cst_10 = arith.constant dense<0.000000e+00> : vector<1x64xf32>
    %9 = tpu.matmul %7, %8, %cst_10 {dimension_numbers = #tpu.dot_dimension_numbers<[1], [0], [0], [1], [0, 0, 1, 1], [], []>} : vector<1x4xf32>, vector<4x64xf32>, vector<1x64xf32> -> vector<1x64xf32>
    %c0_11 = arith.constant 0 : index
    %c0_12 = arith.constant 0 : index
    %10 = vector.load %arg5[%c0_11, %c0_12] : memref<1x64xf32, #tpu.memory_space<vmem>>, vector<1x64xf32>
    %11 = arith.addf %9, %10 : vector<1x64xf32>
    %12 = arith.negf %11 : vector<1x64xf32>
    %13 = math.exp %12 : vector<1x64xf32>
    %cst_13 = arith.constant 1.000000e+00 : f32
    %14 = vector.broadcast %cst_13 : f32 to vector<1x64xf32>
    %15 = arith.addf %14, %13 : vector<1x64xf32>
    %16 = arith.divf %14, %15 : vector<1x64xf32>
    %17 = vector.shape_cast %16 : vector<1x64xf32> to vector<1x64x1xf32>
    %18 = vector.broadcast %17 : vector<1x64x1xf32> to vector<1x64x256xf32>
    %19 = arith.mulf %0, %18 : vector<1x64x256xf32>
    %cst_14 = arith.constant dense<0.000000e+00> : vector<1x256xf32>
    %20 = vector.multi_reduction <add>, %19, %cst_14 [1] : vector<1x64x256xf32> to vector<1x256xf32>
    %c0_15 = arith.constant 0 : index
    %c0_16 = arith.constant 0 : index
    %21 = vector.load %arg6[%c0_15, %c0_16] : memref<256x256xf32, #tpu.memory_space<vmem>>, vector<256x256xf32>
    %cst_17 = arith.constant dense<0.000000e+00> : vector<1x256xf32>
    %22 = tpu.matmul %20, %21, %cst_17 {dimension_numbers = #tpu.dot_dimension_numbers<[1], [0], [0], [1], [0, 0, 1, 1], [], []>} : vector<1x256xf32>, vector<256x256xf32>, vector<1x256xf32> -> vector<1x256xf32>
    %c0_18 = arith.constant 0 : index
    %23 = memref.load %arg7[%c0_18] : memref<1xf32, #tpu.memory_space<smem>>
    %24 = vector.broadcast %23 : f32 to vector<1x256xf32>
    %25 = arith.addf %22, %24 : vector<1x256xf32>
    %26 = arith.negf %25 : vector<1x256xf32>
    %27 = math.exp %26 : vector<1x256xf32>
    %cst_19 = arith.constant 1.000000e+00 : f32
    %28 = vector.broadcast %cst_19 : f32 to vector<1x256xf32>
    %29 = arith.addf %28, %27 : vector<1x256xf32>
    %30 = arith.divf %28, %29 : vector<1x256xf32>
    %31 = vector.shape_cast %30 : vector<1x256xf32> to vector<1x1x256xf32>
    %32 = vector.broadcast %31 : vector<1x1x256xf32> to vector<1x64x256xf32>
    %33 = arith.mulf %19, %32 : vector<1x64x256xf32>
    %c0_20 = arith.constant 0 : index
    %c0_21 = arith.constant 0 : index
    %c0_22 = arith.constant 0 : index
    %34 = vector.load %arg8[%c0_20, %c0_21, %c0_22] : memref<1x64x256xf32, #tpu.memory_space<vmem>>, vector<1x64x256xf32>
    tpu.vector_store %arg8[%c0_20, %c0_21, %c0_22], %33 {strides = array<i32>} : memref<1x64x256xf32, #tpu.memory_space<vmem>>, vector<1x64x256xf32>,
    return
  }
  func.func @transform_0(%arg0: i32) -> (i32, i32, i32) {
    %c0_i32 = arith.constant 0 : i32
    %c0_i32_0 = arith.constant 0 : i32
    %c0_i32_1 = arith.constant 0 : i32
    return %arg0, %c0_i32, %c0_i32_0 : i32, i32, i32
  }
  func.func @transform_1(%arg0: i32) -> (i32, i32) {
    %c0_i32 = arith.constant 0 : i32
    %c0_i32_0 = arith.constant 0 : i32
    %c0_i32_1 = arith.constant 0 : i32
    return %c0_i32, %c0_i32_0 : i32, i32
  }
  func.func @transform_2(%arg0: i32) -> (i32, i32) {
    %c0_i32 = arith.constant 0 : i32
    %c0_i32_0 = arith.constant 0 : i32
    %c0_i32_1 = arith.constant 0 : i32
    return %c0_i32, %c0_i32_0 : i32, i32
  }
  func.func @transform_3(%arg0: i32) -> (i32, i32) {
    %c0_i32 = arith.constant 0 : i32
    %c0_i32_0 = arith.constant 0 : i32
    %c0_i32_1 = arith.constant 0 : i32
    return %c0_i32, %c0_i32_0 : i32, i32
  }
  func.func @transform_4(%arg0: i32) -> (i32, i32) {
    %c0_i32 = arith.constant 0 : i32
    %c0_i32_0 = arith.constant 0 : i32
    %c0_i32_1 = arith.constant 0 : i32
    return %c0_i32, %c0_i32_0 : i32, i32
  }
  func.func @transform_5(%arg0: i32) -> (i32, i32) {
    %c0_i32 = arith.constant 0 : i32
    %c0_i32_0 = arith.constant 0 : i32
    %c0_i32_1 = arith.constant 0 : i32
    return %c0_i32, %c0_i32_0 : i32, i32
  }
  func.func @transform_6(%arg0: i32) -> i32 {
    %c0_i32 = arith.constant 0 : i32
    %c0_i32_0 = arith.constant 0 : i32
    return %c0_i32 : i32
  }
  func.func @transform_7(%arg0: i32) -> (i32, i32, i32) {
    %c0_i32 = arith.constant 0 : i32
    %c0_i32_0 = arith.constant 0 : i32
    %c0_i32_1 = arith.constant 0 : i32
    return %arg0, %c0_i32, %c0_i32_0 : i32, i32, i32
  }
}

</mosaic_0001>

<llo_original>
// kernel: cbam_forward.1
$region0: #{cbam_forward.1}
  #allocation0 [shape = 'u32[]', space=smem, size = 0x4, offset = 0x4, fixed_abs, tag = 'smem constant byte address 0x4 - core index']
  #allocation1 [shape = 'u32[144,128]{1,0:T(1,128)}', space=vmem, size = 0x12000, scoped, tag = 'internal scratch']
  #allocation2 [shape = 'f32[1]{0:T(128)S(6)}', space=smem, size = 0x200, scoped, tag = 'scoped memory for cbam_forward.1']
  %s0 = inlined_call_operand.vmem [shape: f32[2,64,256], index: 0, kind: input, shape index: {}]
  %s1 = inlined_call_operand.vmem [shape: f32[64,4], index: 1, kind: input, shape index: {}]
  %s2 = inlined_call_operand.vmem [shape: f32[1,4], index: 2, kind: input, shape index: {}]
  %s3 = inlined_call_operand.vmem [shape: f32[4,64], index: 3, kind: input, shape index: {}]
  %s4 = inlined_call_operand.vmem [shape: f32[1,64], index: 4, kind: input, shape index: {}]
  %s5 = inlined_call_operand.vmem [shape: f32[256,256], index: 5, kind: input, shape index: {}]
  %s6 = inlined_call_operand.<no memory space> [shape: f32[1], index: 6, kind: input, shape index: {}]
  %s7 = inlined_call_operand.vmem [shape: f32[2,64,256], index: 7, kind: output, shape index: {}]
  %s8 = sld [smem:[#allocation0]]
  $region61: #{cbam_forward.1} parent=0
    _
  %s10 = ssub.s32 1, %s8
  %s11 = scalar_select 0, %s10, %s8
  %12 = sst [smem:[#allocation2]] %s6
  loop: start=0, step=1, limit=4
  $region2: #{cbam_forward.1} parent=0 // loop_pre_header
    _
  $region3: #{cbam_forward.1} parent=0 // loop_header
    %s14 = sphi 0, %s18
    %p15 = scmp.ge.s32.totalorder %s14, 4
    %s24 = sphi 0, %s26
    %s27 = sphi 0, %s24
    %s28 = sphi 0, %s27
    %s44 = sphi 0, %s28
    %s48 = sphi 0, %s48
    %s50 = sphi 0, %s48
    %s51 = sphi 0, %s50
    %s65 = sphi 0, %s51
    %s69 = sphi 0, %s69
    %s71 = sphi 0, %s69
    %s72 = sphi 0, %s71
    %s86 = sphi 0, %s72
    %s90 = sphi 0, %s90
    %s92 = sphi 0, %s90
    %s93 = sphi 0, %s92
    %s107 = sphi 0, %s93
    %s111 = sphi 0, %s111
    %s113 = sphi 0, %s111
    %s114 = sphi 0, %s113
    %s128 = sphi 0, %s114
    %s132 = sphi 0, %s132
    %s134 = sphi 0, %s132
    %s135 = sphi 0, %s134
    %s149 = sphi 0, %s135
    %s153 = sphi 0, %s153
    %s155 = sphi 0, %s153
    %s156 = sphi 0, %s155
    %s170 = sphi 0, %s156
    %s176 = sphi 0, %s178
    %s179 = sphi 0, %s176
    %s180 = sphi 0, %s179
    %s196 = sphi 0, %s180
  $region4: #{cbam_forward.1} parent=0 // loop_header_branch
    %17 = sbr.rel (%p15) target = $region8
  $region5: #{cbam_forward.1} parent=0 // loop_body
    %s19 = ssub.s32 %s14, 1
    %s20 = ssub.s32 %s14, 2
    %s21 = sadd.s32 %s14, 1
    %s22 = ssub.s32 %s14, %s21
    %p23 = scmp.eq.s32.totalorder %s22, 0
    %s25 = sadd.s32 %s24, 1
    %s26 = scalar_select %p23, %s24, %s25
    %p29 = pneg %p23
    %p30 = scmp.eq.s32.totalorder %s14, 1
    %p31 = por %p29, %p30
    %p32 = scmp.ne.s32.totalorder %s24, %s27
    %p33 = scmp.eq.s32.totalorder %s14, 0
    %p34 = por %p32, %p33
    %p35 = scmp.ne.s32.totalorder %s24, %s27
    %p36 = scmp.eq.s32.totalorder %s19, 1
    %p37 = por %p35, %p36
    %p38 = scmp.ne.s32.totalorder %s27, %s28
    %p39 = scmp.eq.s32.totalorder %s19, 0
    %p40 = por %p38, %p39
    %p41 = scmp.ne.s32.totalorder %s27, %s28
    %p42 = scmp.eq.s32.totalorder %s20, 1
    %p43 = por %p41, %p42
    %p45 = scmp.ne.s32.totalorder %s28, %s44
    %p46 = scmp.eq.s32.totalorder %s20, 0
    %p47 = por %p45, %p46
    %s49 = sadd.s32 %s48, 1
    %p52 = scmp.eq.s32.totalorder %s14, 1
    %p53 = scmp.ne.s32.totalorder %s48, %s50
    %p54 = scmp.eq.s32.totalorder %s14, 0
    %p55 = por %p53, %p54
    %p56 = scmp.ne.s32.totalorder %s48, %s50
    %p57 = scmp.eq.s32.totalorder %s19, 1
    %p58 = por %p56, %p57
    %p59 = scmp.ne.s32.totalorder %s50, %s51
    %p60 = scmp.eq.s32.totalorder %s19, 0
    %p61 = por %p59, %p60
    %p62 = scmp.ne.s32.totalorder %s50, %s51
    %p63 = scmp.eq.s32.totalorder %s20, 1
    %p64 = por %p62, %p63
    %p66 = scmp.ne.s32.totalorder %s51, %s65
    %p67 = scmp.eq.s32.totalorder %s20, 0
    %p68 = por %p66, %p67
    %s70 = sadd.s32 %s69, 1
    %p73 = scmp.eq.s32.totalorder %s14, 1
    %p74 = scmp.ne.s32.totalorder %s69, %s71
    %p75 = scmp.eq.s32.totalorder %s14, 0
    %p76 = por %p74, %p75
    %p77 = scmp.ne.s32.totalorder %s69, %s71
    %p78 = scmp.eq.s32.totalorder %s19, 1
    %p79 = por %p77, %p78
    %p80 = scmp.ne.s32.totalorder %s71, %s72
    %p81 = scmp.eq.s32.totalorder %s19, 0
    %p82 = por %p80, %p81
    %p83 = scmp.ne.s32.totalorder %s71, %s72
    %p84 = scmp.eq.s32.totalorder %s20, 1
    %p85 = por %p83, %p84
    %p87 = scmp.ne.s32.totalorder %s72, %s86
    %p88 = scmp.eq.s32.totalorder %s20, 0
    %p89 = por %p87, %p88
    %s91 = sadd.s32 %s90, 1
    %p94 = scmp.eq.s32.totalorder %s14, 1
    %p95 = scmp.ne.s32.totalorder %s90, %s92
    %p96 = scmp.eq.s32.totalorder %s14, 0
    %p97 = por %p95, %p96
    %p98 = scmp.ne.s32.totalorder %s90, %s92
    %p99 = scmp.eq.s32.totalorder %s19, 1
    %p100 = por %p98, %p99
    %p101 = scmp.ne.s32.totalorder %s92, %s93
    %p102 = scmp.eq.s32.totalorder %s19, 0
    %p103 = por %p101, %p102
    %p104 = scmp.ne.s32.totalorder %s92, %s93
    %p105 = scmp.eq.s32.totalorder %s20, 1
    %p106 = por %p104, %p105
    %p108 = scmp.ne.s32.totalorder %s93, %s107
    %p109 = scmp.eq.s32.totalorder %s20, 0
    %p110 = por %p108, %p109
    %s112 = sadd.s32 %s111, 1
    %p115 = scmp.eq.s32.totalorder %s14, 1
    %p116 = scmp.ne.s32.totalorder %s111, %s113
    %p117 = scmp.eq.s32.totalorder %s14, 0
    %p118 = por %p116, %p117
    %p119 = scmp.ne.s32.totalorder %s111, %s113
    %p120 = scmp.eq.s32.totalorder %s19, 1
    %p121 = por %p119, %p120
    %p122 = scmp.ne.s32.totalorder %s113, %s114
    %p123 = scmp.eq.s32.totalorder %s19, 0
    %p124 = por %p122, %p123
    %p125 = scmp.ne.s32.totalorder %s113, %s114
    %p126 = scmp.eq.s32.totalorder %s20, 1
    %p127 = por %p125, %p126
    %p129 = scmp.ne.s32.totalorder %s114, %s128
    %p130 = scmp.eq.s32.totalorder %s20, 0
    %p131 = por %p129, %p130
    %s133 = sadd.s32 %s132, 1
    %p136 = scmp.eq.s32.totalorder %s14, 1
    %p137 = scmp.ne.s32.totalorder %s132, %s134
    %p138 = scmp.eq.s32.totalorder %s14, 0
    %p139 = por %p137, %p138
    %p140 = scmp.ne.s32.totalorder %s132, %s134
    %p141 = scmp.eq.s32.totalorder %s19, 1
    %p142 = por %p140, %p141
    %p143 = scmp.ne.s32.totalorder %s134, %s135
    %p144 = scmp.eq.s32.totalorder %s19, 0
    %p145 = por %p143, %p144
    %p146 = scmp.ne.s32.totalorder %s134, %s135
    %p147 = scmp.eq.s32.totalorder %s20, 1
    %p148 = por %p146, %p147
    %p150 = scmp.ne.s32.totalorder %s135, %s149
    %p151 = scmp.eq.s32.totalorder %s20, 0
    %p152 = por %p150, %p151
    %s154 = sadd.s32 %s153, 1
    %p157 = scmp.eq.s32.totalorder %s14, 1
    %p158 = scmp.ne.s32.totalorder %s153, %s155
    %p159 = scmp.eq.s32.totalorder %s14, 0
    %p160 = por %p158, %p159
    %p161 = scmp.ne.s32.totalorder %s153, %s155
    %p162 = scmp.eq.s32.totalorder %s19, 1
    %p163 = por %p161, %p162
    %p164 = scmp.ne.s32.totalorder %s155, %s156
    %p165 = scmp.eq.s32.totalorder %s19, 0
    %p166 = por %p164, %p165
    %p167 = scmp.ne.s32.totalorder %s155, %s156
    %p168 = scmp.eq.s32.totalorder %s20, 1
    %p169 = por %p167, %p168
    %p171 = scmp.ne.s32.totalorder %s156, %s170
    %p172 = scmp.eq.s32.totalorder %s20, 0
    %p173 = por %p171, %p172
    %s174 = ssub.s32 %s14, %s21
    %p175 = scmp.eq.s32.totalorder %s174, 0
    %s177 = sadd.s32 %s176, 1
    %s178 = scalar_select %p175, %s176, %s177
    %p181 = pneg %p175
    %p182 = scmp.eq.s32.totalorder %s14, 1
    %p183 = por %p181, %p182
    %p184 = scmp.ne.s32.totalorder %s176, %s179
    %p185 = scmp.eq.s32.totalorder %s14, 0
    %p186 = por %p184, %p185
    %p187 = scmp.ne.s32.totalorder %s176, %s179
    %p188 = scmp.eq.s32.totalorder %s19, 1
    %p189 = por %p187, %p188
    %p190 = scmp.ne.s32.totalorder %s179, %s180
    %p191 = scmp.eq.s32.totalorder %s19, 0
    %p192 = por %p190, %p191
    %p193 = scmp.ne.s32.totalorder %s179, %s180
    %p194 = scmp.eq.s32.totalorder %s20, 1
    %p195 = por %p193, %p194
    %p197 = scmp.ne.s32.totalorder %s180, %s196
    %p198 = scmp.eq.s32.totalorder %s20, 0
    %p199 = por %p197, %p198
    %p200 = scmp.le.s32.totalorder 1, %s14
    %p201 = scmp.lt.s32.totalorder %s14, 3
    %p202 = pnand %p200, %p201
    %p203 = pneg %p202
    // Predicated region
    $region9: #{cbam_forward.1} parent=5 // pred_check
      _
    $region10: #{cbam_forward.1} parent=5 // pred_check_branch
      %205 = sbr.rel (%p202) target = $region12
    $region11: #{cbam_forward.1} parent=5 // pred_region
      %s206 = ssub.s32 %s14, 1
      // Predicated region
      $region13: #{cbam_forward.1} parent=11 // pred_check
        %p207 = pneg %p61
      $region14: #{cbam_forward.1} parent=11 // pred_check_branch
        %209 = sbr.rel (%p207) target = $region16
      $region15: #{cbam_forward.1} parent=11 // pred_region
        _
      $region16: #{cbam_forward.1} parent=11 // pred_fallthru
        _
      // Predicated region
      $region17: #{cbam_forward.1} parent=11 // pred_check
        %p210 = pneg %p82
      $region18: #{cbam_forward.1} parent=11 // pred_check_branch
        %212 = sbr.rel (%p210) target = $region20
      $region19: #{cbam_forward.1} parent=11 // pred_region
        _
      $region20: #{cbam_forward.1} parent=11 // pred_fallthru
        _
      // Predicated region
      $region21: #{cbam_forward.1} parent=11 // pred_check
        %p213 = pneg %p103
      $region22: #{cbam_forward.1} parent=11 // pred_check_branch
        %215 = sbr.rel (%p213) target = $region24
      $region23: #{cbam_forward.1} parent=11 // pred_region
        _
      $region24: #{cbam_forward.1} parent=11 // pred_fallthru
        _
      // Predicated region
      $region25: #{cbam_forward.1} parent=11 // pred_check
        %p216 = pneg %p124
      $region26: #{cbam_forward.1} parent=11 // pred_check_branch
        %218 = sbr.rel (%p216) target = $region28
      $region27: #{cbam_forward.1} parent=11 // pred_region
        _
      $region28: #{cbam_forward.1} parent=11 // pred_fallthru
        _
      // Predicated region
      $region29: #{cbam_forward.1} parent=11 // pred_check
        %p219 = pneg %p145
      $region30: #{cbam_forward.1} parent=11 // pred_check_branch
        %221 = sbr.rel (%p219) target = $region32
      $region31: #{cbam_forward.1} parent=11 // pred_region
        _
      $region32: #{cbam_forward.1} parent=11 // pred_fallthru
        _
      // Predicated region
      $region33: #{cbam_forward.1} parent=11 // pred_check
        %p222 = pneg %p166
      $region34: #{cbam_forward.1} parent=11 // pred_check_branch
        %224 = sbr.rel (%p222) target = $region36
      $region35: #{cbam_forward.1} parent=11 // pred_region
        _
      $region36: #{cbam_forward.1} parent=11 // pred_fallthru
        _
    $region12: #{cbam_forward.1} parent=5 // pred_fallthru
      _
    %p225 = scmp.lt.s32.totalorder %s14, 2
    // Predicated region
    $region37: #{cbam_forward.1} parent=5 // pred_check
      %p226 = pneg %p225
    $region38: #{cbam_forward.1} parent=5 // pred_check_branch
      %228 = sbr.rel (%p226) target = $region40
    $region39: #{cbam_forward.1} parent=5 // pred_region
      // Predicated region
      $region41: #{cbam_forward.1} parent=39 // pred_check
        %p229 = pneg %p34
      $region42: #{cbam_forward.1} parent=39 // pred_check_branch
        %231 = sbr.rel (%p229) target = $region44
      $region43: #{cbam_forward.1} parent=39 // pred_region
        %p232 = scmp.lt.s32.totalorder %s14, 1
        %s233 = scalar_select %p232, %s14, 1
        %s234 = smul.addr %s233, 16
        %s235 = smul.addr %s234, 8
        %s236 = scalar_lea.vmem %s0, %s235
      $region44: #{cbam_forward.1} parent=39 // pred_fallthru
        _
    $region40: #{cbam_forward.1} parent=5 // pred_fallthru
      _
    %p237 = scmp.le.s32.totalorder 1, %s14
    %p238 = scmp.lt.s32.totalorder %s14, 3
    %p239 = pnand %p237, %p238
    %p240 = pneg %p239
    // Predicated region
    $region45: #{cbam_forward.1} parent=5 // pred_check
      _
    $region46: #{cbam_forward.1} parent=5 // pred_check_branch
      %242 = sbr.rel (%p239) target = $region48
    $region47: #{cbam_forward.1} parent=5 // pred_region
      %s243 = ssub.s32 %s14, 1
      %p244 = scmp.lt.s32.totalorder %s19, 1
      %s245 = scalar_select %p244, %s19, 1
      %s246 = smul.addr %s245, 16
      %s247 = smul.addr %s246, 8
      %s248 = scalar_lea.vmem %s0, %s247
      %p249 = pneg %p40
      %p250 = pneg %p37
      %p251 = pneg %p61
      %p252 = pneg %p58
      %p253 = pneg %p82
      %p254 = pneg %p79
      %p255 = pneg %p103
      %p256 = pneg %p100
      %p257 = pneg %p124
      %p258 = pneg %p121
      %p259 = pneg %p145
      %p260 = pneg %p142
      %p261 = pneg %p166
      %p262 = pneg %p163
      %p263 = pneg %p192
      %p264 = pneg %p189
      %p265 = scmp.lt.s32.totalorder %s19, 1
      %s266 = scalar_select %p265, %s19, 1
      %s267 = smul.addr %s266, 16
      %s268 = smul.addr %s267, 8
      %s269 = scalar_lea.vmem %s7, %s268
      %p270 = scmp.lt.s32.totalorder %s19, 1
      %s271 = scalar_select %p270, %s19, 1
      %s272 = smul.addr %s271, 16
      %s273 = smul.addr %s272, 8
      %s274 = scalar_lea.vmem %s0, %s273
      %p275 = scmp.lt.s32.totalorder %s19, 1
      %s276 = scalar_select %p275, %s19, 1
      %s277 = smul.addr %s276, 16
      %s278 = smul.addr %s277, 8
      %s279 = scalar_lea.vmem %s7, %s278
      %v280 = vld [vmem:[%s274] sm:$0xff]
      %v281 = vld [vmem:[%s274 + $0x8] sm:$0xff]
      %v282 = vld [vmem:[%s274 + $0x10] sm:$0xff]
      %v283 = vld [vmem:[%s274 + $0x18] sm:$0xff]
      %v284 = vld [vmem:[%s274 + $0x20] sm:$0xff]
      %v285 = vld [vmem:[%s274 + $0x28] sm:$0xff]
      %v286 = vld [vmem:[%s274 + $0x30] sm:$0xff]
      %v287 = vld [vmem:[%s274 + $0x38] sm:$0xff]
      %v288 = vld [vmem:[%s274 + $0x40] sm:$0xff]
      %v289 = vld [vmem:[%s274 + $0x48] sm:$0xff]
      %v290 = vld [vmem:[%s274 + $0x50] sm:$0xff]
      %v291 = vld [vmem:[%s274 + $0x58] sm:$0xff]
      %v292 = vld [vmem:[%s274 + $0x60] sm:$0xff]
      %v293 = vld [vmem:[%s274 + $0x68] sm:$0xff]
      %v294 = vld [vmem:[%s274 + $0x70] sm:$0xff]
      %v295 = vld [vmem:[%s274 + $0x78] sm:$0xff]
      %v296 = vadd.f32 %v280, %v281
      %297 = vadd.xlane.f32.xlu0 %v296
      %v298 = vpop.xlane.xlu0 %297
      %v299 = vadd.f32 %v282, %v283
      %300 = vadd.xlane.f32.xlu0 %v299
      %v301 = vpop.xlane.xlu0 %300
      %v302 = vadd.f32 %v284, %v285
      %303 = vadd.xlane.f32.xlu0 %v302
      %v304 = vpop.xlane.xlu0 %303
      %v305 = vadd.f32 %v286, %v287
      %306 = vadd.xlane.f32.xlu0 %v305
      %v307 = vpop.xlane.xlu0 %306
      %v308 = vadd.f32 %v288, %v289
      %309 = vadd.xlane.f32.xlu0 %v308
      %v310 = vpop.xlane.xlu0 %309
      %v311 = vadd.f32 %v290, %v291
      %312 = vadd.xlane.f32.xlu0 %v311
      %v313 = vpop.xlane.xlu0 %312
      %v314 = vadd.f32 %v292, %v293
      %315 = vadd.xlane.f32.xlu0 %v314
      %v316 = vpop.xlane.xlu0 %315
      %v317 = vadd.f32 %v294, %v295
      %318 = vadd.xlane.f32.xlu0 %v317
      %v319 = vpop.xlane.xlu0 %318
      %v320 = vld [vmem:[%s1] sm:$0xff]
      %v321 = vld [vmem:[%s1 + $0x8] sm:$0xff]
      %v322 = vld [vmem:[%s1 + $0x10] sm:$0xff]
      %v323 = vld [vmem:[%s1 + $0x18] sm:$0xff]
      %v324 = vld [vmem:[%s1 + $0x20] sm:$0xff]
      %v325 = vld [vmem:[%s1 + $0x28] sm:$0xff]
      %v326 = vld [vmem:[%s1 + $0x30] sm:$0xff]
      %v327 = vld [vmem:[%s1 + $0x38] sm:$0xff]
      %v328 = vld [vmem:[%s2] sm:$0x1]
      %v337 = vlaneseq
      %v338 = vand.u32 %v337, 127
      %v339 = vlaneseq
      %v340 = vshrl.u32 %v339, 7
      %v341 = vsub.s32 %v338, %v340
      %v342 = vrot.slane %v298, %v341
      %v343 = vadd.s32 %v338, 4294967288
      %v344 = vlaneseq
      %v345 = vshrl.u32 %v344, 7
      %v346 = vsub.s32 %v343, %v345
      %v347 = vrot.slane %v301, %v346
      %vm348 = vcmask 130112
      %v349 = vsel %vm348, %v347, %v342
      %v350 = vadd.s32 %v338, 4294967280
      %v351 = vlaneseq
      %v352 = vshrl.u32 %v351, 7
      %v353 = vsub.s32 %v350, %v352
      %v354 = vrot.slane %v304, %v353
      %vm355 = vcmask 195712
      %v356 = vsel %vm355, %v354, %v349
      %v357 = vadd.s32 %v338, 4294967272
      %v358 = vlaneseq
      %v359 = vshrl.u32 %v358, 7
      %v360 = vsub.s32 %v357, %v359
      %v361 = vrot.slane %v307, %v360
      %vm362 = vcmask 261312
      %v363 = vsel %vm362, %v361, %v356
      %v364 = vadd.s32 %v338, 4294967264
      %v365 = vlaneseq
      %v366 = vshrl.u32 %v365, 7
      %v367 = vsub.s32 %v364, %v366
      %v368 = vrot.slane %v310, %v367
      %vm369 = vcmask 326912
      %v370 = vsel %vm369, %v368, %v363
      %v371 = vadd.s32 %v338, 4294967256
      %v372 = vlaneseq
      %v373 = vshrl.u32 %v372, 7
      %v374 = vsub.s32 %v371, %v373
      %v375 = vrot.slane %v313, %v374
      %vm376 = vcmask 392512
      %v377 = vsel %vm376, %v375, %v370
      %v378 = vadd.s32 %v338, 4294967248
      %v379 = vlaneseq
      %v380 = vshrl.u32 %v379, 7
      %v381 = vsub.s32 %v378, %v380
      %v382 = vrot.slane %v316, %v381
      %vm383 = vcmask 458112
      %v384 = vsel %vm383, %v382, %v377
      %v385 = vadd.s32 %v338, 4294967240
      %v386 = vlaneseq
      %v387 = vshrl.u32 %v386, 7
      %v388 = vsub.s32 %v385, %v387
      %v389 = vrot.slane %v319, %v388
      %vm390 = vcmask 523712
      %v391 = vsel %vm390, %v389, %v384
      %vm392 = vcmask 523264
      %v393 = vsel %vm392, %v391, 0
      %395 = vmatprep.subr.mxu0 0.0
      %396 = vmatpush1.msra.mxu0 %v320
      %397 = vmatprep.subr.mxu0 0.0
      %398 = vmatpush1.msra.mxu0 %v321
      %399 = vmatprep.subr.mxu0 0.0
      %400 = vmatpush1.msra.mxu0 %v322
      %401 = vmatprep.subr.mxu0 0.0
      %402 = vmatpush1.msra.mxu0 %v323
      %403 = vmatprep.subr.mxu0 0.0
      %404 = vmatpush1.msra.mxu0 %v324
      %405 = vmatprep.subr.mxu0 0.0
      %406 = vmatpush1.msra.mxu0 %v325
      %407 = vmatprep.subr.mxu0 0.0
      %408 = vmatpush1.msra.mxu0 %v326
      %409 = vmatprep.subr.mxu0 0.0
      %410 = vmatpush1.msra.mxu0 %v327
      %411 = vmatprep.subr.mxu0 0.0
      %412 = vmatpush1.msra.mxu0 0.0
      %413 = vmatprep.subr.mxu0 0.0
      %414 = vmatpush1.msra.mxu0 0.0
      %415 = vmatprep.subr.mxu0 0.0
      %416 = vmatpush1.msra.mxu0 0.0
      %417 = vmatprep.subr.mxu0 0.0
      %418 = vmatpush1.msra.mxu0 0.0
      %419 = vmatprep.subr.mxu0 0.0
      %420 = vmatpush1.msra.mxu0 0.0
      %421 = vmatprep.subr.mxu0 0.0
      %422 = vmatpush1.msra.mxu0 0.0
      %423 = vmatprep.subr.mxu0 0.0
      %424 = vmatpush1.msra.mxu0 0.0
      %425 = vmatprep.subr.mxu0 0.0
      %426 = vmatpush1.msra.mxu0 0.0
      %427 = vmatprep.subr.mxu0 0.0
      %428 = vmatpush1.msra.mxu0 0.0
      %429 = vmatprep.subr.mxu0 0.0
      %430 = vmatpush1.msra.mxu0 0.0
      %431 = vmatprep.subr.mxu0 0.0
      %432 = vmatpush1.msra.mxu0 0.0
      %433 = vmatprep.subr.mxu0 0.0
      %434 = vmatpush1.msra.mxu0 0.0
      %435 = vmatprep.subr.mxu0 0.0
      %436 = vmatpush1.msra.mxu0 0.0
      %437 = vmatprep.subr.mxu0 0.0
      %438 = vmatpush1.msra.mxu0 0.0
      %439 = vmatprep.subr.mxu0 0.0
      %440 = vmatpush1.msra.mxu0 0.0
      %441 = vmatprep.subr.mxu0 0.0
      %442 = vmatpush1.msra.mxu0 0.0
      %443 = vmatprep.subr.mxu0 0.0
      %444 = vmatpush1.msra.mxu0 0.0
      %445 = vmatprep.subr.mxu0 0.0
      %446 = vmatpush1.msra.mxu0 0.0
      %447 = vmatprep.subr.mxu0 0.0
      %448 = vmatpush1.msra.mxu0 0.0
      %449 = vmatprep.subr.mxu0 0.0
      %450 = vmatpush1.msra.mxu0 0.0
      %451 = vmatprep.subr.mxu0 0.0
      %452 = vmatpush1.msra.mxu0 0.0
      %453 = vmatprep.subr.mxu0 0.0
      %454 = vmatpush1.msra.mxu0 0.0
      %455 = vmatprep.subr.mxu0 0.0
      %456 = vmatpush1.msra.mxu0 0.0
      %457 = vmatprep.subr.mxu0 0.0
      %458 = vmatpush1.msra.mxu0 0.0
      %459 = vmatprep.mubr.f32.mxu0 0.0
      %460 = vmatmul.mubr.f32.gmra.mrb[0].mxu0 %v393
      %v461 = vpop.f32.mrb[0].mxu0
      %v462 = vadd.f32 %v328, %v461
      %v463 = vpop.f32.mrb[0].mxu0
      %464 = vdwg.mxu0
      %v465 = vmax.f32 %v462, 0.0
      %v466 = vld [vmem:[%s3] sm:$0xf]
      %v467 = vld [vmem:[%s4] sm:$0x1]
      %vm468 = vcmask 31744
      %v470 = vsel %vm468, %v465, 0
      %vm472 = vcmask 1043456
      %v474 = vsel %vm472, %v466, 0
      %476 = vmatprep.subr.mxu0 0.0
      %477 = vmatpush1.msra.mxu0 %v474
      %478 = vmatprep.subr.mxu0 0.0
      %479 = vmatpush1.msra.mxu0 0.0
      %480 = vmatprep.subr.mxu0 0.0
      %481 = vmatpush1.msra.mxu0 0.0
      %482 = vmatprep.subr.mxu0 0.0
      %483 = vmatpush1.msra.mxu0 0.0
      %484 = vmatprep.subr.mxu0 0.0
      %485 = vmatpush1.msra.mxu0 0.0
      %486 = vmatprep.subr.mxu0 0.0
      %487 = vmatpush1.msra.mxu0 0.0
      %488 = vmatprep.subr.mxu0 0.0
      %489 = vmatpush1.msra.mxu0 0.0
      %490 = vmatprep.subr.mxu0 0.0
      %491 = vmatpush1.msra.mxu0 0.0
      %492 = vmatprep.subr.mxu0 0.0
      %493 = vmatpush1.msra.mxu0 0.0
      %494 = vmatprep.subr.mxu0 0.0
      %495 = vmatpush1.msra.mxu0 0.0
      %496 = vmatprep.subr.mxu0 0.0
      %497 = vmatpush1.msra.mxu0 0.0
      %498 = vmatprep.subr.mxu0 0.0
      %499 = vmatpush1.msra.mxu0 0.0
      %500 = vmatprep.subr.mxu0 0.0
      %501 = vmatpush1.msra.mxu0 0.0
      %502 = vmatprep.subr.mxu0 0.0
      %503 = vmatpush1.msra.mxu0 0.0
      %504 = vmatprep.subr.mxu0 0.0
      %505 = vmatpush1.msra.mxu0 0.0
      %506 = vmatprep.subr.mxu0 0.0
      %507 = vmatpush1.msra.mxu0 0.0
      %508 = vmatprep.subr.mxu0 0.0
      %509 = vmatpush1.msra.mxu0 0.0
      %510 = vmatprep.subr.mxu0 0.0
      %511 = vmatpush1.msra.mxu0 0.0
      %512 = vmatprep.subr.mxu0 0.0
      %513 = vmatpush1.msra.mxu0 0.0
      %514 = vmatprep.subr.mxu0 0.0
      %515 = vmatpush1.msra.mxu0 0.0
      %516 = vmatprep.subr.mxu0 0.0
      %517 = vmatpush1.msra.mxu0 0.0
      %518 = vmatprep.subr.mxu0 0.0
      %519 = vmatpush1.msra.mxu0 0.0
      %520 = vmatprep.subr.mxu0 0.0
      %521 = vmatpush1.msra.mxu0 0.0
      %522 = vmatprep.subr.mxu0 0.0
      %523 = vmatpush1.msra.mxu0 0.0
      %524 = vmatprep.subr.mxu0 0.0
      %525 = vmatpush1.msra.mxu0 0.0
      %526 = vmatprep.subr.mxu0 0.0
      %527 = vmatpush1.msra.mxu0 0.0
      %528 = vmatprep.subr.mxu0 0.0
      %529 = vmatpush1.msra.mxu0 0.0
      %530 = vmatprep.subr.mxu0 0.0
      %531 = vmatpush1.msra.mxu0 0.0
      %532 = vmatprep.subr.mxu0 0.0
      %533 = vmatpush1.msra.mxu0 0.0
      %534 = vmatprep.subr.mxu0 0.0
      %535 = vmatpush1.msra.mxu0 0.0
      %536 = vmatprep.subr.mxu0 0.0
      %537 = vmatpush1.msra.mxu0 0.0
      %538 = vmatprep.subr.mxu0 0.0
      %539 = vmatpush1.msra.mxu0 0.0
      %540 = vmatprep.mubr.f32.mxu0 0.0
      %541 = vmatmul.mubr.f32.gmra.mrb[0].mxu0 %v470
      %v542 = vpop.f32.mrb[0].mxu0
      %v543 = vadd.f32 %v467, %v542
      %v544 = vpop.f32.mrb[0].mxu0
      %545 = vdwg.mxu0
      %v546 = vxor.u32 %v543, 2147483648
      %v547 = vmul.f32 %v546, 1.442695
      %v548 = vpow.pop %v547
      %v549 = vadd.f32 %v548, 1.0
      %v550 = vrcp.pop %v549
      %v551 = vmul.f32 1.0, %v550
      %v552 = vlaneseq
      %v553 = vshrl.u32 %v552, 7
      %v554 = vsub.s32 0, %v553
      %v555 = vrot.slane %v551, %v554
      %557 = vbcast.lane.b32.xlu0 %v555, 256
      %v558 = vpop.permute.xlu0 %557
      %s560 = sor.u32 256, 8
      %561 = vbcast.lane.b32.xlu0 %v555, %s560
      %v562 = vpop.permute.xlu0 %561
      %s564 = sor.u32 256, 16
      %565 = vbcast.lane.b32.xlu0 %v555, %s564
      %v566 = vpop.permute.xlu0 %565
      %s568 = sor.u32 256, 24
      %569 = vbcast.lane.b32.xlu0 %v555, %s568
      %v570 = vpop.permute.xlu0 %569
      %s572 = sor.u32 256, 32
      %573 = vbcast.lane.b32.xlu0 %v555, %s572
      %v574 = vpop.permute.xlu0 %573
      %s576 = sor.u32 256, 40
      %577 = vbcast.lane.b32.xlu0 %v555, %s576
      %v578 = vpop.permute.xlu0 %577
      %s580 = sor.u32 256, 48
      %581 = vbcast.lane.b32.xlu0 %v555, %s580
      %v582 = vpop.permute.xlu0 %581
      %s584 = sor.u32 256, 56
      %585 = vbcast.lane.b32.xlu0 %v555, %s584
      %v586 = vpop.permute.xlu0 %585
      %v587 = vmul.f32 %v280, %v558
      %v588 = vmul.f32 %v281, %v558
      %v589 = vmul.f32 %v282, %v562
      %v590 = vmul.f32 %v283, %v562
      %v591 = vmul.f32 %v284, %v566
      %v592 = vmul.f32 %v285, %v566
      %v593 = vmul.f32 %v286, %v570
      %v594 = vmul.f32 %v287, %v570
      %v595 = vmul.f32 %v288, %v574
      %v596 = vmul.f32 %v289, %v574
      %v597 = vmul.f32 %v290, %v578
      %v598 = vmul.f32 %v291, %v578
      %v599 = vmul.f32 %v292, %v582
      %v600 = vmul.f32 %v293, %v582
      %v601 = vmul.f32 %v294, %v586
      %v602 = vmul.f32 %v295, %v586
      %v603 = vadd.f32 %v587, %v589
      %v604 = vadd.f32 %v603, %v591
      %v605 = vadd.f32 %v604, %v593
      %v606 = vadd.f32 %v605, %v595
      %v607 = vadd.f32 %v606, %v597
      %v608 = vadd.f32 %v607, %v599
      %v609 = vadd.f32 %v608, %v601
      %v610 = vrot.slane %v609, 4
      %v611 = vadd.f32 %v609, %v610
      %v612 = vrot.slane %v611, 2
      %v613 = vadd.f32 %v611, %v612
      %v614 = vrot.slane %v613, 1
      %v615 = vadd.f32 %v613, %v614
      %v616 = vadd.f32 %v588, %v590
      %v617 = vadd.f32 %v616, %v592
      %v618 = vadd.f32 %v617, %v594
      %v619 = vadd.f32 %v618, %v596
      %v620 = vadd.f32 %v619, %v598
      %v621 = vadd.f32 %v620, %v600
      %v622 = vadd.f32 %v621, %v602
      %v623 = vrot.slane %v622, 4
      %v624 = vadd.f32 %v622, %v623
      %v625 = vrot.slane %v624, 2
      %v626 = vadd.f32 %v624, %v625
      %v627 = vrot.slane %v626, 1
      %v628 = vadd.f32 %v626, %v627
      %v629 = vld [vmem:[%s5] sm:$0xff]
      %v630 = vld [vmem:[%s5 + $0x8] sm:$0xff]
      %v631 = vld [vmem:[%s5 + $0x10] sm:$0xff]
      %v632 = vld [vmem:[%s5 + $0x18] sm:$0xff]
      %v633 = vld [vmem:[%s5 + $0x20] sm:$0xff]
      %v634 = vld [vmem:[%s5 + $0x28] sm:$0xff]
      %v635 = vld [vmem:[%s5 + $0x30] sm:$0xff]
      %v636 = vld [vmem:[%s5 + $0x38] sm:$0xff]
      %v637 = vld [vmem:[%s5 + $0x40] sm:$0xff]
      %v638 = vld [vmem:[%s5 + $0x48] sm:$0xff]
      %v639 = vld [vmem:[%s5 + $0x50] sm:$0xff]
      %v640 = vld [vmem:[%s5 + $0x58] sm:$0xff]
      %v641 = vld [vmem:[%s5 + $0x60] sm:$0xff]
      %v642 = vld [vmem:[%s5 + $0x68] sm:$0xff]
      %v643 = vld [vmem:[%s5 + $0x70] sm:$0xff]
      %v644 = vld [vmem:[%s5 + $0x78] sm:$0xff]
      %v645 = vld [vmem:[%s5 + $0x80] sm:$0xff]
      %v646 = vld [vmem:[%s5 + $0x88] sm:$0xff]
      %v647 = vld [vmem:[%s5 + $0x90] sm:$0xff]
      %v648 = vld [vmem:[%s5 + $0x98] sm:$0xff]
      %v649 = vld [vmem:[%s5 + $0xa0] sm:$0xff]
      %v650 = vld [vmem:[%s5 + $0xa8] sm:$0xff]
      %v651 = vld [vmem:[%s5 + $0xb0] sm:$0xff]
      %v652 = vld [vmem:[%s5 + $0xb8] sm:$0xff]
      %v653 = vld [vmem:[%s5 + $0xc0] sm:$0xff]
      %v654 = vld [vmem:[%s5 + $0xc8] sm:$0xff]
      %v655 = vld [vmem:[%s5 + $0xd0] sm:$0xff]
      %v656 = vld [vmem:[%s5 + $0xd8] sm:$0xff]
      %v657 = vld [vmem:[%s5 + $0xe0] sm:$0xff]
      %v658 = vld [vmem:[%s5 + $0xe8] sm:$0xff]
      %v659 = vld [vmem:[%s5 + $0xf0] sm:$0xff]
      %v660 = vld [vmem:[%s5 + $0xf8] sm:$0xff]
      %v661 = vld [vmem:[%s5 + $0x100] sm:$0xff]
      %v662 = vld [vmem:[%s5 + $0x108] sm:$0xff]
      %v663 = vld [vmem:[%s5 + $0x110] sm:$0xff]
      %v664 = vld [vmem:[%s5 + $0x118] sm:$0xff]
      %v665 = vld [vmem:[%s5 + $0x120] sm:$0xff]
      %v666 = vld [vmem:[%s5 + $0x128] sm:$0xff]
      %v667 = vld [vmem:[%s5 + $0x130] sm:$0xff]
      %v668 = vld [vmem:[%s5 + $0x138] sm:$0xff]
      %v669 = vld [vmem:[%s5 + $0x140] sm:$0xff]
      %v670 = vld [vmem:[%s5 + $0x148] sm:$0xff]
      %v671 = vld [vmem:[%s5 + $0x150] sm:$0xff]
      %v672 = vld [vmem:[%s5 + $0x158] sm:$0xff]
      %v673 = vld [vmem:[%s5 + $0x160] sm:$0xff]
      %v674 = vld [vmem:[%s5 + $0x168] sm:$0xff]
      %v675 = vld [vmem:[%s5 + $0x170] sm:$0xff]
      %v676 = vld [vmem:[%s5 + $0x178] sm:$0xff]
      %v677 = vld [vmem:[%s5 + $0x180] sm:$0xff]
      %v678 = vld [vmem:[%s5 + $0x188] sm:$0xff]
      %v679 = vld [vmem:[%s5 + $0x190] sm:$0xff]
      %v680 = vld [vmem:[%s5 + $0x198] sm:$0xff]
      %v681 = vld [vmem:[%s5 + $0x1a0] sm:$0xff]
      %v682 = vld [vmem:[%s5 + $0x1a8] sm:$0xff]
      %v683 = vld [vmem:[%s5 + $0x1b0] sm:$0xff]
      %v684 = vld [vmem:[%s5 + $0x1b8] sm:$0xff]
      %v685 = vld [vmem:[%s5 + $0x1c0] sm:$0xff]
      %v686 = vld [vmem:[%s5 + $0x1c8] sm:$0xff]
      %v687 = vld [vmem:[%s5 + $0x1d0] sm:$0xff]
      %v688 = vld [vmem:[%s5 + $0x1d8] sm:$0xff]
      %v689 = vld [vmem:[%s5 + $0x1e0] sm:$0xff]
      %v690 = vld [vmem:[%s5 + $0x1e8] sm:$0xff]
      %v691 = vld [vmem:[%s5 + $0x1f0] sm:$0xff]
      %v692 = vld [vmem:[%s5 + $0x1f8] sm:$0xff]
      %s693 = sld [smem:[#allocation2]]
      %v694 = vstv %s693
      %695 = vmatprep.subr.mxu0 %v630
      %696 = vmatpush1.msra.mxu0 %v629
      %697 = vmatprep.subr.mxu0 %v632
      %698 = vmatpush1.msra.mxu0 %v631
      %699 = vmatprep.subr.mxu0 %v634
      %700 = vmatpush1.msra.mxu0 %v633
      %701 = vmatprep.subr.mxu0 %v636
      %702 = vmatpush1.msra.mxu0 %v635
      %703 = vmatprep.subr.mxu0 %v638
      %704 = vmatpush1.msra.mxu0 %v637
      %705 = vmatprep.subr.mxu0 %v640
      %706 = vmatpush1.msra.mxu0 %v639
      %707 = vmatprep.subr.mxu0 %v642
      %708 = vmatpush1.msra.mxu0 %v641
      %709 = vmatprep.subr.mxu0 %v644
      %710 = vmatpush1.msra.mxu0 %v643
      %711 = vmatprep.subr.mxu0 %v646
      %712 = vmatpush1.msra.mxu0 %v645
      %713 = vmatprep.subr.mxu0 %v648
      %714 = vmatpush1.msra.mxu0 %v647
      %715 = vmatprep.subr.mxu0 %v650
      %716 = vmatpush1.msra.mxu0 %v649
      %717 = vmatprep.subr.mxu0 %v652
      %718 = vmatpush1.msra.mxu0 %v651
      %719 = vmatprep.subr.mxu0 %v654
      %720 = vmatpush1.msra.mxu0 %v653
      %721 = vmatprep.subr.mxu0 %v656
      %722 = vmatpush1.msra.mxu0 %v655
      %723 = vmatprep.subr.mxu0 %v658
      %724 = vmatpush1.msra.mxu0 %v657
      %725 = vmatprep.subr.mxu0 %v660
      %726 = vmatpush1.msra.mxu0 %v659
      %727 = vmatprep.subr.mxu0 %v662
      %728 = vmatpush1.msra.mxu0 %v661
      %729 = vmatprep.subr.mxu0 %v664
      %730 = vmatpush1.msra.mxu0 %v663
      %731 = vmatprep.subr.mxu0 %v666
      %732 = vmatpush1.msra.mxu0 %v665
      %733 = vmatprep.subr.mxu0 %v668
      %734 = vmatpush1.msra.mxu0 %v667
      %735 = vmatprep.subr.mxu0 %v670
      %736 = vmatpush1.msra.mxu0 %v669
      %737 = vmatprep.subr.mxu0 %v672
      %738 = vmatpush1.msra.mxu0 %v671
      %739 = vmatprep.subr.mxu0 %v674
      %740 = vmatpush1.msra.mxu0 %v673
      %741 = vmatprep.subr.mxu0 %v676
      %742 = vmatpush1.msra.mxu0 %v675
      %743 = vmatprep.subr.mxu0 %v678
      %744 = vmatpush1.msra.mxu0 %v677
      %745 = vmatprep.subr.mxu0 %v680
      %746 = vmatpush1.msra.mxu0 %v679
      %747 = vmatprep.subr.mxu0 %v682
      %748 = vmatpush1.msra.mxu0 %v681
      %749 = vmatprep.subr.mxu0 %v684
      %750 = vmatpush1.msra.mxu0 %v683
      %751 = vmatprep.subr.mxu0 %v686
      %752 = vmatpush1.msra.mxu0 %v685
      %753 = vmatprep.subr.mxu0 %v688
      %754 = vmatpush1.msra.mxu0 %v687
      %755 = vmatprep.subr.mxu0 %v690
      %756 = vmatpush1.msra.mxu0 %v689
      %757 = vmatprep.subr.mxu0 %v692
      %758 = vmatpush1.msra.mxu0 %v691
      %759 = vmatprep.mubr.f32.mxu0 %v628
      %760 = vmatmul.mubr.f32.gmra.mrb[0].mxu0 %v615
      %v761 = vpop.f32.mrb[0].mxu0
      %v762 = vadd.f32 %v694, %v761
      %v763 = vpop.f32.mrb[0].mxu0
      %v764 = vadd.f32 %v694, %v763
      %765 = vdwg.mxu0
      %v766 = vxor.u32 %v762, 2147483648
      %v767 = vxor.u32 %v764, 2147483648
      %v768 = vmul.f32 %v766, 1.442695
      %v769 = vpow.pop %v768
      %v770 = vmul.f32 %v767, 1.442695
      %v771 = vpow.pop %v770
      %v772 = vadd.f32 %v769, 1.0
      %v773 = vadd.f32 %v771, 1.0
      %v774 = vrcp.pop %v772
      %v775 = vmul.f32 1.0, %v774
      %v776 = vrcp.pop %v773
      %v777 = vmul.f32 1.0, %v776
      %v778 = vlaneseq
      %v779 = vshrl.u32 %v778, 7
      %v780 = vsub.s32 0, %v779
      %v781 = vrot.slane %v775, %v780
      %v782 = vlaneseq
      %v783 = vshrl.u32 %v782, 7
      %v784 = vsub.s32 0, %v783
      %v785 = vrot.slane %v777, %v784
      %v786 = vmul.f32 %v587, %v781
      %v787 = vmul.f32 %v588, %v785
      %v788 = vmul.f32 %v589, %v781
      %v789 = vmul.f32 %v590, %v785
      %v790 = vmul.f32 %v591, %v781
      %v791 = vmul.f32 %v592, %v785
      %v792 = vmul.f32 %v593, %v781
      %v793 = vmul.f32 %v594, %v785
      %v794 = vmul.f32 %v595, %v781
      %v795 = vmul.f32 %v596, %v785
      %v796 = vmul.f32 %v597, %v781
      %v797 = vmul.f32 %v598, %v785
      %v798 = vmul.f32 %v599, %v781
      %v799 = vmul.f32 %v600, %v785
      %v800 = vmul.f32 %v601, %v781
      %v801 = vmul.f32 %v602, %v785
      %802 = vst [vmem:[%s279] sm:$0xff] %v786
      %803 = vst [vmem:[%s279 + $0x8] sm:$0xff] %v787
      %804 = vst [vmem:[%s279 + $0x10] sm:$0xff] %v788
      %805 = vst [vmem:[%s279 + $0x18] sm:$0xff] %v789
      %806 = vst [vmem:[%s279 + $0x20] sm:$0xff] %v790
      %807 = vst [vmem:[%s279 + $0x28] sm:$0xff] %v791
      %808 = vst [vmem:[%s279 + $0x30] sm:$0xff] %v792
      %809 = vst [vmem:[%s279 + $0x38] sm:$0xff] %v793
      %810 = vst [vmem:[%s279 + $0x40] sm:$0xff] %v794
      %811 = vst [vmem:[%s279 + $0x48] sm:$0xff] %v795
      %812 = vst [vmem:[%s279 + $0x50] sm:$0xff] %v796
      %813 = vst [vmem:[%s279 + $0x58] sm:$0xff] %v797
      %814 = vst [vmem:[%s279 + $0x60] sm:$0xff] %v798
      %815 = vst [vmem:[%s279 + $0x68] sm:$0xff] %v799
      %816 = vst [vmem:[%s279 + $0x70] sm:$0xff] %v800
      %817 = vst [vmem:[%s279 + $0x78] sm:$0xff] %v801
      %p818 = scmp.lt.s32.totalorder %s19, 1
      %s819 = scalar_select %p818, %s19, 1
      %s820 = smul.addr %s819, 16
      %s821 = smul.addr %s820, 8
      %s822 = scalar_lea.vmem %s7, %s821
      // Predicated region
      $region49: #{cbam_forward.1} parent=47 // pred_check
        %p823 = pneg %p189
      $region50: #{cbam_forward.1} parent=47 // pred_check_branch
        %825 = sbr.rel (%p823) target = $region52
      $region51: #{cbam_forward.1} parent=47 // pred_region
        _
      $region52: #{cbam_forward.1} parent=47 // pred_fallthru
        _
    $region48: #{cbam_forward.1} parent=5 // pred_fallthru
      _
    %p826 = scmp.le.s32.totalorder 2, %s14
    // Predicated region
    $region53: #{cbam_forward.1} parent=5 // pred_check
      %p827 = pneg %p826
    $region54: #{cbam_forward.1} parent=5 // pred_check_branch
      %829 = sbr.rel (%p827) target = $region56
    $region55: #{cbam_forward.1} parent=5 // pred_region
      %s830 = ssub.s32 %s14, 2
      // Predicated region
      $region57: #{cbam_forward.1} parent=55 // pred_check
        %p831 = pneg %p195
      $region58: #{cbam_forward.1} parent=55 // pred_check_branch
        %833 = sbr.rel (%p831) target = $region60
      $region59: #{cbam_forward.1} parent=55 // pred_region
        %p834 = scmp.lt.s32.totalorder %s20, 1
        %s835 = scalar_select %p834, %s20, 1
        %s836 = smul.addr %s835, 16
        %s837 = smul.addr %s836, 8
        %s838 = scalar_lea.vmem %s7, %s837
      $region60: #{cbam_forward.1} parent=55 // pred_fallthru
        _
    $region56: #{cbam_forward.1} parent=5 // pred_fallthru
      _
  $region6: #{cbam_forward.1} parent=0 // loop_footer
    %s18 = sadd.s32 1, %s14
  $region7: #{cbam_forward.1} parent=0 // loop_footer_branch
    %13 = sbr.rel target = $region3
  $region8: #{cbam_forward.1} parent=0 // loop_exit
    _

</llo_original>
